<compile_context>
chip_gen: v7x
topology: tpu7x:2x2x1
jax: 0.10.0
libtpu: 0.0.40
codegen_flags: <defaults>
</compile_context>

<pallas_src>
import functools

import numpy as np
import jax
import jax.numpy as jnp
from jax import lax
from jax.experimental import pallas as pl
from jax.experimental.pallas import tpu as pltpu


# 3x3 stencil offsets in the same row-major order as a flattened (C, 9) weight.
_OFF3 = tuple((dh, dw) for dh in (-1, 0, 1) for dw in (-1, 0, 1))


def _knet_kernel(u_ref, a_ref, out_ref, *, shifts):
    """Fused KNet forward on one batch tile.

    u_ref  : (bt, HWp)  VMEM  flattened input field (lane index = h*W + w, zero-padded lanes)
    a_ref  : (T,  HWp)  VMEM  batch-invariant effective-tap coefficient planes
    out_ref: (bt, HWp)  VMEM

    out = sum_t roll(u, shifts[t]) * A[t]; all conv weights, the material-phase
    pattern g and every zero-padding boundary mask are pre-folded into A.
    """
    u = u_ref[...]                                   # (bt, HWp)
    hwp = u.shape[-1]
    acc = None
    for t, s in enumerate(shifts):
        sm = (-s) % hwp
        ut = u if sm == 0 else pltpu.roll(u, sm, axis=1)   # XLU slot
        term = ut * a_ref[t:t + 1, :]                      # sublane-broadcast multiply
        acc = term if acc is None else acc + term
    out_ref[...] = acc


def _effective_tap_planes(global_pattern, w1, w2, H, W, *, w1_is_delta):
    """Fold conv1(3x3, zero pad) -> (*g) -> conv2(3x3, zero pad) into per-total-offset
    coefficient planes A so that  out[h,w] = sum_f A[f][h,w] * u[h+fh, w+fw]  (u taken
    as zero outside the image; that mask is folded into A as well)."""
    C = global_pattern.shape[1]
    g = global_pattern.astype(jnp.float32).reshape(C, H, W)
    w2f = w2.astype(jnp.float32).reshape(C, 9)
    w1f = None if w1_is_delta else w1.astype(jnp.float32).reshape(C, 9)

    hh = jnp.arange(H, dtype=jnp.int32)[:, None]
    ww = jnp.arange(W, dtype=jnp.int32)[None, :]

    def mask(dh, dw):  # 1.0 where (h+dh, w+dw) lies inside the image
        return (((hh + dh) >= 0) & ((hh + dh) < H) &
                ((ww + dw) >= 0) & ((ww + dw) < W)).astype(jnp.float32)

    gp = jnp.pad(g, ((0, 0), (1, 1), (1, 1)))        # zero-padded pattern for shifts

    planes = {}
    for ei, (eh, ew) in enumerate(_OFF3):            # conv2 tap e
        ge = gp[:, 1 + eh:1 + eh + H, 1 + ew:1 + ew + W]   # g[c, h+eh, w+ew] (0 outside)
        me = mask(eh, ew)                                  # conv2 zero-padding mask
        if w1_is_delta:
            pairs = (((0, 0), w2f[:, ei]),)                # net1 == identity stencil
        else:
            pairs = tuple(((dh, dw), w2f[:, ei] * w1f[:, di])
                          for di, (dh, dw) in enumerate(_OFF3))
        for (dh, dw), coef in pairs:                       # conv1 tap d
            plane = jnp.einsum('c,chw->hw', coef, ge) * me
            f = (eh + dh, ew + dw)
            planes[f] = plane if f not in planes else planes[f] + plane

    taps = sorted(planes.keys())                     # deterministic order
    shifts = tuple(fh * W + fw for fh, fw in taps)   # flat lane shifts
    # mask(*f) is the conv1 zero-padding mask for the total offset (kills roll wrap too)
    a = jnp.stack([planes[f] * mask(*f) for f in taps]).reshape(len(taps), H * W)
    return a, shifts


def _choose_batch_tile(B):
    """Batch rows per grid step: multiple of 8 (sublane-dense), dividing the padded
    batch (no ragged tail), capped at 64 (vreg live ranges), >= 2 grid steps when
    possible so v7x's two TensorCores both get work."""
    b8 = ((B + 7) // 8) * 8
    if b8 <= 8:
        return b8, 1
    for bt in (64, 32, 16, 8):
        if 2 * bt <= b8 and b8 % bt == 0:
            return bt, b8 // bt
    return 8, b8 // 8


def knet_forward(u, global_pattern, w1, w2, nnode_edge, *, w1_is_delta=False):
    """KNet forward.

    u              : (B, 1, H, W)            input field (NCHW)
    global_pattern : (1, C, nnode_edge, ..)  one-hot material-phase pattern
    w1, w2         : (C, 9)                  net1 / net2 3x3 stencils, row-major flattened
    w1_is_delta    : static flag — True iff net1 holds the module's delta (identity)
                     stencil (as set in __init__); enables the 9-tap fast path.
    """
    B, _, H, W = u.shape
    C = global_pattern.shape[1]
    if H != nnode_edge:
        # forward(): F.pad(self.global_pattern, (1, 1, 1, 1), 'constant', 1)
        global_pattern = jnp.pad(global_pattern, ((0, 0), (0, 0), (1, 1), (1, 1)),
                                 constant_values=1.0)

    if w1_is_delta:
        # Guard against a silently-wrong fast path when weights are concrete.
        try:
            w1_host = np.asarray(jax.device_get(w1), dtype=np.float32).reshape(C, 9)
        except Exception:     # traced under jit — trust the caller's static flag
            w1_host = None
        if w1_host is not None:
            expect = np.zeros((C, 9), np.float32)
            expect[:, 4] = 1.0
            if not np.allclose(w1_host, expect):
                raise ValueError("w1_is_delta=True but net1 weights are not the identity stencil")

    HW = H * W
    a_planes, shifts = _effective_tap_planes(global_pattern, w1, w2, H, W,
                                             w1_is_delta=w1_is_delta)

    # Lane-dense repack: flat pixel index on lanes, batch on sublanes.
    hwp = ((HW + 127) // 128) * 128                  # keep the output store unmasked
    bt, nb = _choose_batch_tile(B)
    b_pad = bt * nb

    u_flat = u.astype(jnp.float32).reshape(B, HW)
    if hwp != HW:
        u_flat = jnp.pad(u_flat, ((0, 0), (0, hwp - HW)))
        a_planes = jnp.pad(a_planes, ((0, 0), (0, hwp - HW)))
    if b_pad != B:                                   # only when B is not a multiple of 8
        u_flat = jnp.pad(u_flat, ((0, b_pad - B), (0, 0)))

    kernel = functools.partial(_knet_kernel, shifts=shifts)
    out_flat = pl.pallas_call(
        kernel,
        out_shape=jax.ShapeDtypeStruct((b_pad, hwp), jnp.float32),
        grid=(nb,),
        in_specs=[
            pl.BlockSpec((bt, hwp), lambda i: (i, 0)),             # u batch tile
            pl.BlockSpec((len(shifts), hwp), lambda i: (0, 0)),    # A planes (replicated)
        ],
        out_specs=pl.BlockSpec((bt, hwp), lambda i: (i, 0)),
        compiler_params=pltpu.CompilerParams(
            dimension_semantics=("parallel",)),                    # megacore on v7x
    )(u_flat, a_planes)

    return out_flat[:B, :HW].reshape(B, 1, H, W)


if __name__ == "__main__":
    nnode_edge = 16
    n_channel = 4
    B = 2

    key = jax.random.PRNGKey(0)
    k_u, k_kern, k_phase, k_w1 = jax.random.split(key, 4)

    # --- deterministic synthetic "mesh" data (module __init__ inputs) ---
    kernel_dict = jax.random.normal(k_kern, (n_channel, 3, 3), dtype=jnp.float32)
    phase = jax.random.randint(k_phase, (nnode_edge, nnode_edge), 0, n_channel)
    global_pattern = (phase[None, None, :, :] ==
                      jnp.arange(n_channel)[None, :, None, None]).astype(jnp.float32)

    # net1 weights: delta (identity) 3x3 kernel per output channel (as in __init__)
    delta = jnp.zeros((3, 3), jnp.float32).at[1, 1].set(1.0)
    w1_full = jnp.broadcast_to(delta, (n_channel, 1, 3, 3)).astype(jnp.float32)   # OIHW
    w2_full = kernel_dict[None, :, :, :].astype(jnp.float32)                       # OIHW (1,C,3,3)
    w1 = w1_full.reshape(n_channel, 9)
    w2 = w2_full.reshape(n_channel, 9)

    u = jax.random.normal(k_u, (B, 1, nnode_edge, nnode_edge), dtype=jnp.float32)

    # --- plain-JAX reference (mirrors the PyTorch forward) ---
    dn = ('NCHW', 'OIHW', 'NCHW')

    def ref_forward(u_in, w1_oihw):
        u_split = lax.conv_general_dilated(u_in, w1_oihw, (1, 1), [(1, 1), (1, 1)],
                                           dimension_numbers=dn)
        u_split = u_split * global_pattern
        return lax.conv_general_dilated(u_split, w2_full, (1, 1), [(1, 1), (1, 1)],
                                        dimension_numbers=dn)

    # 1) the module's actual configuration (net1 == delta kernel): 9-tap fast path
    out_fast = jax.block_until_ready(
        knet_forward(u, global_pattern, w1, w2, nnode_edge, w1_is_delta=True))
    ref = ref_forward(u, w1_full)
    assert out_fast.shape == (B, 1, nnode_edge, nnode_edge)
    assert out_fast.dtype == jnp.float32
    assert jnp.allclose(out_fast, ref, atol=1e-5, rtol=1e-5)

    # 2) general 25-tap path with arbitrary net1 weights
    w1_rand_full = jax.random.normal(k_w1, (n_channel, 1, 3, 3), dtype=jnp.float32)
    out_gen = jax.block_until_ready(
        knet_forward(u, global_pattern, w1_rand_full.reshape(n_channel, 9), w2,
                     nnode_edge, w1_is_delta=False))
    ref_gen = ref_forward(u, w1_rand_full)
    assert jnp.allclose(out_gen, ref_gen, atol=1e-5, rtol=1e-5)

    # 3) multi-tile batch path (nb > 1, ragged batch padded to sublane multiples)
    B2 = 19
    u_big = jax.random.normal(k_u, (B2, 1, nnode_edge, nnode_edge), dtype=jnp.float32)
    out_big = jax.block_until_ready(
        knet_forward(u_big, global_pattern, w1, w2, nnode_edge, w1_is_delta=True))
    ref_big = ref_forward(u_big, w1_full)
    assert out_big.shape == (B2, 1, nnode_edge, nnode_edge)
    assert jnp.allclose(out_big, ref_big, atol=1e-5, rtol=1e-5)

    print("KERNEL_OK")
</pallas_src>

<mosaic_0001>
module attributes {stable_mosaic.version = 11 : i64} {
  func.func @_knet_kernel(%arg0: i32, %arg1: memref<8x256xf32, #tpu.memory_space<vmem>>, %arg2: memref<9x256xf32, #tpu.memory_space<vmem>>, %arg3: memref<8x256xf32, #tpu.memory_space<vmem>>) attributes {dimension_semantics = [#tpu.dimension_semantics<parallel>], iteration_bounds = array<i64: 1>, scalar_prefetch = 0 : i64, scratch_operands = 0 : i64, tpu.core_type = #tpu.core_type<tc>, window_params = [{transform_indices = @transform_0, window_bounds = array<i64: 8, 256>}, {pipeline_mode = #tpu.pipeline_mode<synchronous>, transform_indices = @transform_1, window_bounds = array<i64: 9, 256>}, {transform_indices = @transform_2, window_bounds = array<i64: 8, 256>}]} {
    %c0 = arith.constant 0 : index
    %c0_0 = arith.constant 0 : index
    %0 = vector.load %arg1[%c0, %c0_0] : memref<8x256xf32, #tpu.memory_space<vmem>>, vector<8x256xf32>
    %c17_i32 = arith.constant 17 : i32
    %1 = tpu.dynamic_rotate %0 by %c17_i32 dim 1 : vector<8x256xf32>, i32 -> vector<8x256xf32>
    %c0_1 = arith.constant 0 : index
    %c0_2 = arith.constant 0 : index
    %2 = vector.load %arg2[%c0_1, %c0_2] : memref<9x256xf32, #tpu.memory_space<vmem>>, vector<1x256xf32>
    %3 = vector.broadcast %2 : vector<1x256xf32> to vector<8x256xf32>
    %4 = arith.mulf %1, %3 : vector<8x256xf32>
    %c16_i32 = arith.constant 16 : i32
    %5 = tpu.dynamic_rotate %0 by %c16_i32 dim 1 : vector<8x256xf32>, i32 -> vector<8x256xf32>
    %c1 = arith.constant 1 : index
    %c0_3 = arith.constant 0 : index
    %6 = vector.load %arg2[%c1, %c0_3] : memref<9x256xf32, #tpu.memory_space<vmem>>, vector<1x256xf32>
    %7 = vector.broadcast %6 : vector<1x256xf32> to vector<8x256xf32>
    %8 = arith.mulf %5, %7 : vector<8x256xf32>
    %9 = arith.addf %4, %8 : vector<8x256xf32>
    %c15_i32 = arith.constant 15 : i32
    %10 = tpu.dynamic_rotate %0 by %c15_i32 dim 1 : vector<8x256xf32>, i32 -> vector<8x256xf32>
    %c2 = arith.constant 2 : index
    %c0_4 = arith.constant 0 : index
    %11 = vector.load %arg2[%c2, %c0_4] : memref<9x256xf32, #tpu.memory_space<vmem>>, vector<1x256xf32>
    %12 = vector.broadcast %11 : vector<1x256xf32> to vector<8x256xf32>
    %13 = arith.mulf %10, %12 : vector<8x256xf32>
    %14 = arith.addf %9, %13 : vector<8x256xf32>
    %c1_i32 = arith.constant 1 : i32
    %15 = tpu.dynamic_rotate %0 by %c1_i32 dim 1 : vector<8x256xf32>, i32 -> vector<8x256xf32>
    %c3 = arith.constant 3 : index
    %c0_5 = arith.constant 0 : index
    %16 = vector.load %arg2[%c3, %c0_5] : memref<9x256xf32, #tpu.memory_space<vmem>>, vector<1x256xf32>
    %17 = vector.broadcast %16 : vector<1x256xf32> to vector<8x256xf32>
    %18 = arith.mulf %15, %17 : vector<8x256xf32>
    %19 = arith.addf %14, %18 : vector<8x256xf32>
    %c4 = arith.constant 4 : index
    %c0_6 = arith.constant 0 : index
    %20 = vector.load %arg2[%c4, %c0_6] : memref<9x256xf32, #tpu.memory_space<vmem>>, vector<1x256xf32>
    %21 = vector.broadcast %20 : vector<1x256xf32> to vector<8x256xf32>
    %22 = arith.mulf %0, %21 : vector<8x256xf32>
    %23 = arith.addf %19, %22 : vector<8x256xf32>
    %c255_i32 = arith.constant 255 : i32
    %24 = tpu.dynamic_rotate %0 by %c255_i32 dim 1 : vector<8x256xf32>, i32 -> vector<8x256xf32>
    %c5 = arith.constant 5 : index
    %c0_7 = arith.constant 0 : index
    %25 = vector.load %arg2[%c5, %c0_7] : memref<9x256xf32, #tpu.memory_space<vmem>>, vector<1x256xf32>
    %26 = vector.broadcast %25 : vector<1x256xf32> to vector<8x256xf32>
    %27 = arith.mulf %24, %26 : vector<8x256xf32>
    %28 = arith.addf %23, %27 : vector<8x256xf32>
    %c241_i32 = arith.constant 241 : i32
    %29 = tpu.dynamic_rotate %0 by %c241_i32 dim 1 : vector<8x256xf32>, i32 -> vector<8x256xf32>
    %c6 = arith.constant 6 : index
    %c0_8 = arith.constant 0 : index
    %30 = vector.load %arg2[%c6, %c0_8] : memref<9x256xf32, #tpu.memory_space<vmem>>, vector<1x256xf32>
    %31 = vector.broadcast %30 : vector<1x256xf32> to vector<8x256xf32>
    %32 = arith.mulf %29, %31 : vector<8x256xf32>
    %33 = arith.addf %28, %32 : vector<8x256xf32>
    %c240_i32 = arith.constant 240 : i32
    %34 = tpu.dynamic_rotate %0 by %c240_i32 dim 1 : vector<8x256xf32>, i32 -> vector<8x256xf32>
    %c7 = arith.constant 7 : index
    %c0_9 = arith.constant 0 : index
    %35 = vector.load %arg2[%c7, %c0_9] : memref<9x256xf32, #tpu.memory_space<vmem>>, vector<1x256xf32>
    %36 = vector.broadcast %35 : vector<1x256xf32> to vector<8x256xf32>
    %37 = arith.mulf %34, %36 : vector<8x256xf32>
    %38 = arith.addf %33, %37 : vector<8x256xf32>
    %c239_i32 = arith.constant 239 : i32
    %39 = tpu.dynamic_rotate %0 by %c239_i32 dim 1 : vector<8x256xf32>, i32 -> vector<8x256xf32>
    %c8 = arith.constant 8 : index
    %c0_10 = arith.constant 0 : index
    %40 = vector.load %arg2[%c8, %c0_10] : memref<9x256xf32, #tpu.memory_space<vmem>>, vector<1x256xf32>
    %41 = vector.broadcast %40 : vector<1x256xf32> to vector<8x256xf32>
    %42 = arith.mulf %39, %41 : vector<8x256xf32>
    %43 = arith.addf %38, %42 : vector<8x256xf32>
    %c0_11 = arith.constant 0 : index
    %c0_12 = arith.constant 0 : index
    %44 = vector.load %arg3[%c0_11, %c0_12] : memref<8x256xf32, #tpu.memory_space<vmem>>, vector<8x256xf32>
    tpu.vector_store %arg3[%c0_11, %c0_12], %43 {strides = array<i32>} : memref<8x256xf32, #tpu.memory_space<vmem>>, vector<8x256xf32>,
    return
  }
  func.func @transform_0(%arg0: i32) -> (i32, i32) {
    %c0_i32 = arith.constant 0 : i32
    %c0_i32_0 = arith.constant 0 : i32
    return %arg0, %c0_i32 : i32, i32
  }
  func.func @transform_1(%arg0: i32) -> (i32, i32) {
    %c0_i32 = arith.constant 0 : i32
    %c0_i32_0 = arith.constant 0 : i32
    %c0_i32_1 = arith.constant 0 : i32
    return %c0_i32, %c0_i32_0 : i32, i32
  }
  func.func @transform_2(%arg0: i32) -> (i32, i32) {
    %c0_i32 = arith.constant 0 : i32
    %c0_i32_0 = arith.constant 0 : i32
    return %arg0, %c0_i32 : i32, i32
  }
}

</mosaic_0001>

<llo_original>
// kernel: tpu_custom_call.1
$region0: #{tpu_custom_call.1}
  #allocation0 [shape = 'u32[]', space=smem, size = 0x4, offset = 0x4, fixed_abs, tag = 'smem constant byte address 0x4 - core index']
  #allocation1 [shape = 'u32[144,128]{1,0:T(1,128)}', space=vmem, size = 0x12000, scoped, tag = 'internal scratch']
  %s0 = inlined_call_operand.hbm [shape: f32[8,256], index: 0, kind: input, shape index: {}]
  %s1 = inlined_call_operand.hbm [shape: f32[9,256], index: 1, kind: input, shape index: {}]
  %s2 = inlined_call_operand.hbm [shape: f32[8,256], index: 2, kind: output, shape index: {}]
  %s3 = sld [smem:[#allocation0]]
  $region26: #{tpu_custom_call.1} parent=0
    _
  %s5 = ssub.s32 1, %s3
  %s6 = scalar_select 0, %s5, %s3
  $region1: #{tpu_custom_call.1} parent=0
    #allocation2 [shape = 'u8[8192]{0}', space=vmem, size = 0x2000, scoped, tag = 'input window, operand 0, single buffered']
    #allocation3 [shape = 's32[1]{0}', space=sflag, size = 0x4, scoped, tag = 'scoped memory for tpu_custom_call.1']
    #allocation4 [shape = 's32[1]{0}', space=sflag, size = 0x4, scoped, tag = 'scoped memory for tpu_custom_call.1']
    #allocation5 [shape = 'u8[16384]{0}', space=vmem, size = 0x4000, scoped, tag = 'input window, operand 1, single buffered']
    #allocation6 [shape = 's32[1]{0}', space=sflag, size = 0x4, scoped, tag = 'scoped memory for tpu_custom_call.1']
    #allocation7 [shape = 'u8[8192]{0}', space=vmem, size = 0x2000, scoped, tag = 'output window, operand 0, single buffered']
    %7 = vsyncpa [#allocation3], 0
    %8 = vsyncpa [#allocation6], 0
    %9 = vsyncpa [#allocation4], 0
    // Predicated region
    $region2: #{tpu_custom_call.1} parent=1 // pred_check
      _
    $region3: #{tpu_custom_call.1} parent=1 // pred_check_branch
      %11 = sbr.rel (0) target = $region5
    $region4: #{tpu_custom_call.1} parent=1 // pred_region
      %s13 = ssub.s32 256, 256
      %14 = vsyncadd [#allocation3], %s13
      %s16 = sshll.u32 [#allocation2], 4
      %s17 = int_to_ptr.vmem [resolvable:$true] %s16
      %19 = dma.hbm_to_vmem [thread:$0]  %s0, 256, %s17, [#allocation3]
    $region5: #{tpu_custom_call.1} parent=1 // pred_fallthru
      _
    // Predicated region
    $region6: #{tpu_custom_call.1} parent=1 // pred_check
      _
    $region7: #{tpu_custom_call.1} parent=1 // pred_check_branch
      %21 = sbr.rel (0) target = $region9
    $region8: #{tpu_custom_call.1} parent=1 // pred_region
      %s23 = ssub.s32 512, 512
      %24 = vsyncadd [#allocation6], %s23
      %s25 = sshll.u32 [#allocation5], 4
      %s26 = int_to_ptr.vmem [resolvable:$true] %s25
      %31 = dma.hbm_to_vmem [thread:$0]  %s1, 512, %s26, [#allocation6], 256, 256, 16
    $region9: #{tpu_custom_call.1} parent=1 // pred_fallthru
      _
    // Predicated region
    $region10: #{tpu_custom_call.1} parent=1 // pred_check
      _
    $region11: #{tpu_custom_call.1} parent=1 // pred_check_branch
      %33 = sbr.rel (0) target = $region13
    $region12: #{tpu_custom_call.1} parent=1 // pred_region
      %34 = dma.done [#allocation3], 256
    $region13: #{tpu_custom_call.1} parent=1 // pred_fallthru
      _
    // Predicated region
    $region14: #{tpu_custom_call.1} parent=1 // pred_check
      _
    $region15: #{tpu_custom_call.1} parent=1 // pred_check_branch
      %36 = sbr.rel (0) target = $region17
    $region16: #{tpu_custom_call.1} parent=1 // pred_region
      %37 = dma.done [#allocation6], 512
    $region17: #{tpu_custom_call.1} parent=1 // pred_fallthru
      _
    %v38 = vld [vmem:[#allocation2] sm:$0xff]
    %v39 = vld [vmem:[#allocation2 + $0x8] sm:$0xff]
    %40 = vrot.lane.b32.xlu0 %v38, 17
    %v41 = vpop.permute.xlu0 %40
    %42 = vrot.lane.b32.xlu0 %v39, 17
    %v43 = vpop.permute.xlu0 %42
    %v44 = vlaneseq
    %v45 = vand.u32 %v44, 127
    %vm46 = vcmp.lt.s32.totalorder %v45, 17
    %v47 = vsel %vm46, %v41, %v43
    %v48 = vsel %vm46, %v43, %v41
    %v49 = vld [vmem:[#allocation5] ss:$8 sm:$0x3]
    %v51 = vlaneseq
    %v52 = vshrl.u32 %v51, 7
    %v53 = vsub.s32 0, %v52
    %v54 = vrot.slane %v49, %v53
    %v55 = vlaneseq
    %v56 = vshrl.u32 %v55, 7
    %v57 = vsub.s32 1, %v56
    %v58 = vrot.slane %v49, %v57
    %v61 = vmul.f32 %v48, %v54
    %v62 = vmul.f32 %v47, %v58
    %63 = vrot.lane.b32.xlu0 %v38, 16
    %v64 = vpop.permute.xlu0 %63
    %65 = vrot.lane.b32.xlu0 %v39, 16
    %v66 = vpop.permute.xlu0 %65
    %vm67 = vcmp.lt.s32.totalorder %v45, 16
    %v68 = vsel %vm67, %v64, %v66
    %v69 = vsel %vm67, %v66, %v64
    %s70 = scalar_lea.vmem [#allocation5], 1
    %v71 = vld [vmem:[%s70] ss:$8 sm:$0x3]
    %v73 = vlaneseq
    %v74 = vshrl.u32 %v73, 7
    %v75 = vsub.s32 0, %v74
    %v76 = vrot.slane %v71, %v75
    %v77 = vlaneseq
    %v78 = vshrl.u32 %v77, 7
    %v79 = vsub.s32 1, %v78
    %v80 = vrot.slane %v71, %v79
    %v83 = vmul.f32 %v69, %v76
    %v84 = vmul.f32 %v68, %v80
    %v85 = vadd.f32 %v61, %v83
    %v86 = vadd.f32 %v62, %v84
    %87 = vrot.lane.b32.xlu0 %v38, 15
    %v88 = vpop.permute.xlu0 %87
    %89 = vrot.lane.b32.xlu0 %v39, 15
    %v90 = vpop.permute.xlu0 %89
    %vm91 = vcmp.lt.s32.totalorder %v45, 15
    %v92 = vsel %vm91, %v88, %v90
    %v93 = vsel %vm91, %v90, %v88
    %s94 = scalar_lea.vmem [#allocation5], 2
    %v95 = vld [vmem:[%s94] ss:$8 sm:$0x3]
    %v97 = vlaneseq
    %v98 = vshrl.u32 %v97, 7
    %v99 = vsub.s32 0, %v98
    %v100 = vrot.slane %v95, %v99
    %v101 = vlaneseq
    %v102 = vshrl.u32 %v101, 7
    %v103 = vsub.s32 1, %v102
    %v104 = vrot.slane %v95, %v103
    %v107 = vmul.f32 %v93, %v100
    %v108 = vmul.f32 %v92, %v104
    %v109 = vadd.f32 %v85, %v107
    %v110 = vadd.f32 %v86, %v108
    %111 = vrot.lane.b32.xlu0 %v38, 1
    %v112 = vpop.permute.xlu0 %111
    %113 = vrot.lane.b32.xlu0 %v39, 1
    %v114 = vpop.permute.xlu0 %113
    %vm115 = vcmp.lt.s32.totalorder %v45, 1
    %v116 = vsel %vm115, %v112, %v114
    %v117 = vsel %vm115, %v114, %v112
    %s118 = scalar_lea.vmem [#allocation5], 3
    %v119 = vld [vmem:[%s118] ss:$8 sm:$0x3]
    %v121 = vlaneseq
    %v122 = vshrl.u32 %v121, 7
    %v123 = vsub.s32 0, %v122
    %v124 = vrot.slane %v119, %v123
    %v125 = vlaneseq
    %v126 = vshrl.u32 %v125, 7
    %v127 = vsub.s32 1, %v126
    %v128 = vrot.slane %v119, %v127
    %v131 = vmul.f32 %v117, %v124
    %v132 = vmul.f32 %v116, %v128
    %v133 = vadd.f32 %v109, %v131
    %v134 = vadd.f32 %v110, %v132
    %s135 = scalar_lea.vmem [#allocation5], 4
    %v136 = vld [vmem:[%s135] ss:$8 sm:$0x3]
    %v138 = vlaneseq
    %v139 = vshrl.u32 %v138, 7
    %v140 = vsub.s32 0, %v139
    %v141 = vrot.slane %v136, %v140
    %v142 = vlaneseq
    %v143 = vshrl.u32 %v142, 7
    %v144 = vsub.s32 1, %v143
    %v145 = vrot.slane %v136, %v144
    %v148 = vmul.f32 %v38, %v141
    %v149 = vmul.f32 %v39, %v145
    %v150 = vadd.f32 %v133, %v148
    %v151 = vadd.f32 %v134, %v149
    %152 = vrot.lane.b32.xlu0 %v38, 127
    %v153 = vpop.permute.xlu0 %152
    %154 = vrot.lane.b32.xlu0 %v39, 127
    %v155 = vpop.permute.xlu0 %154
    %vm156 = vcmp.lt.s32.totalorder %v45, 127
    %v157 = vsel %vm156, %v153, %v155
    %v158 = vsel %vm156, %v155, %v153
    %s159 = scalar_lea.vmem [#allocation5], 5
    %v160 = vld [vmem:[%s159] ss:$8 sm:$0x3]
    %v162 = vlaneseq
    %v163 = vshrl.u32 %v162, 7
    %v164 = vsub.s32 0, %v163
    %v165 = vrot.slane %v160, %v164
    %v166 = vlaneseq
    %v167 = vshrl.u32 %v166, 7
    %v168 = vsub.s32 1, %v167
    %v169 = vrot.slane %v160, %v168
    %v172 = vmul.f32 %v157, %v165
    %v173 = vmul.f32 %v158, %v169
    %v174 = vadd.f32 %v150, %v172
    %v175 = vadd.f32 %v151, %v173
    %176 = vrot.lane.b32.xlu0 %v38, 113
    %v177 = vpop.permute.xlu0 %176
    %178 = vrot.lane.b32.xlu0 %v39, 113
    %v179 = vpop.permute.xlu0 %178
    %vm180 = vcmp.lt.s32.totalorder %v45, 113
    %v181 = vsel %vm180, %v177, %v179
    %v182 = vsel %vm180, %v179, %v177
    %s183 = scalar_lea.vmem [#allocation5], 6
    %v184 = vld [vmem:[%s183] ss:$8 sm:$0x3]
    %v186 = vlaneseq
    %v187 = vshrl.u32 %v186, 7
    %v188 = vsub.s32 0, %v187
    %v189 = vrot.slane %v184, %v188
    %v190 = vlaneseq
    %v191 = vshrl.u32 %v190, 7
    %v192 = vsub.s32 1, %v191
    %v193 = vrot.slane %v184, %v192
    %v196 = vmul.f32 %v181, %v189
    %v197 = vmul.f32 %v182, %v193
    %v198 = vadd.f32 %v174, %v196
    %v199 = vadd.f32 %v175, %v197
    %200 = vrot.lane.b32.xlu0 %v38, 112
    %v201 = vpop.permute.xlu0 %200
    %202 = vrot.lane.b32.xlu0 %v39, 112
    %v203 = vpop.permute.xlu0 %202
    %vm204 = vcmp.lt.s32.totalorder %v45, 112
    %v205 = vsel %vm204, %v201, %v203
    %v206 = vsel %vm204, %v203, %v201
    %s207 = scalar_lea.vmem [#allocation5], 7
    %v208 = vld [vmem:[%s207] ss:$8 sm:$0x3]
    %v210 = vlaneseq
    %v211 = vshrl.u32 %v210, 7
    %v212 = vsub.s32 0, %v211
    %v213 = vrot.slane %v208, %v212
    %v214 = vlaneseq
    %v215 = vshrl.u32 %v214, 7
    %v216 = vsub.s32 1, %v215
    %v217 = vrot.slane %v208, %v216
    %v220 = vmul.f32 %v205, %v213
    %v221 = vmul.f32 %v206, %v217
    %v222 = vadd.f32 %v198, %v220
    %v223 = vadd.f32 %v199, %v221
    %224 = vrot.lane.b32.xlu0 %v38, 111
    %v225 = vpop.permute.xlu0 %224
    %226 = vrot.lane.b32.xlu0 %v39, 111
    %v227 = vpop.permute.xlu0 %226
    %vm228 = vcmp.lt.s32.totalorder %v45, 111
    %v229 = vsel %vm228, %v225, %v227
    %v230 = vsel %vm228, %v227, %v225
    %s231 = scalar_lea.vmem [#allocation5], 16
    %v232 = vld [vmem:[%s231] ss:$8 sm:$0x3]
    %v234 = vlaneseq
    %v235 = vshrl.u32 %v234, 7
    %v236 = vsub.s32 0, %v235
    %v237 = vrot.slane %v232, %v236
    %v238 = vlaneseq
    %v239 = vshrl.u32 %v238, 7
    %v240 = vsub.s32 1, %v239
    %v241 = vrot.slane %v232, %v240
    %v244 = vmul.f32 %v229, %v237
    %v245 = vmul.f32 %v230, %v241
    %v246 = vadd.f32 %v222, %v244
    %v247 = vadd.f32 %v223, %v245
    %248 = vst [vmem:[#allocation7] sm:$0xff] %v246
    %249 = vst [vmem:[#allocation7 + $0x8] sm:$0xff] %v247
    // Predicated region
    $region18: #{tpu_custom_call.1} parent=1 // pred_check
      _
    $region19: #{tpu_custom_call.1} parent=1 // pred_check_branch
      %251 = sbr.rel (0) target = $region21
    $region20: #{tpu_custom_call.1} parent=1 // pred_region
      %s253 = ssub.s32 256, 256
      %254 = vsyncadd [#allocation4], %s253
      %s256 = sshll.u32 [#allocation7], 4
      %s257 = int_to_ptr.vmem [resolvable:$true] %s256
      %259 = dma.vmem_to_hbm [thread:$0]  %s257, 256, %s2, [#allocation4]
    $region21: #{tpu_custom_call.1} parent=1 // pred_fallthru
      _
    // Predicated region
    $region22: #{tpu_custom_call.1} parent=1 // pred_check
      _
    $region23: #{tpu_custom_call.1} parent=1 // pred_check_branch
      %261 = sbr.rel (0) target = $region25
    $region24: #{tpu_custom_call.1} parent=1 // pred_region
      %262 = dma.done [#allocation4], 256
    $region25: #{tpu_custom_call.1} parent=1 // pred_fallthru
      _
    %263 = vsyncpa [#allocation3], 1
    %264 = vsyncpa [#allocation6], 1
    %265 = vsyncpa [#allocation4], 1

</llo_original>
